<compile_context>
chip_gen: v7x
topology: tpu7x:2x2x1
jax: 0.10.0
libtpu: 0.0.40
codegen_flags: <defaults>
</compile_context>

<pallas_src>
import functools

import jax
import jax.numpy as jnp
from jax import lax
from jax.experimental import pallas as pl
from jax.experimental.pallas import tpu as pltpu

EPS = 1e-5


def _round_up(x, k):
    return (x + k - 1) // k * k


def _vmem_limit():
    mib = 1024 * 1024
    try:
        cap = pltpu.get_tpu_info().vmem_capacity_bytes
        # half of physical: 64 MiB on v5e/v6e (128 MiB phys), 32 MiB on v7x.
        return int(max(32 * mib, min(cap // 2, 100 * mib)))
    except Exception:  # pragma: no cover - conservative fallback
        return 32 * mib


# ----------------------------------------------------------------------------
# Kernel A: fused 1x1 conv (row-tiled matmul, BN scale pre-folded) + bias [+ReLU]
# ----------------------------------------------------------------------------
def _mm_bias_kernel(x_ref, w_ref, b_ref, o_ref, *, relu):
    y = jnp.dot(x_ref[...], w_ref[...], preferred_element_type=jnp.float32)
    y = y + b_ref[...]
    if relu:
        y = jnp.maximum(y, 0.0)
    o_ref[...] = y.astype(o_ref.dtype)


def conv1x1_bn(x2d, w, bias2d, *, relu, out_dtype, row_tile=1024):
    """relu?(x2d @ w + bias).  bf16 MXU inputs, f32 accumulation.

    No host-side pads: K / C_out blocks equal the full array dims (satisfies
    the (8,128) rule) and the row grid is cdiv-based."""
    m, k = x2d.shape
    cout = w.shape[1]
    nb = max(1, -(-m // row_tile))
    tm = min(_round_up(-(-m // nb), 8), _round_up(m, 8))
    grid_m = -(-m // tm)
    return pl.pallas_call(
        functools.partial(_mm_bias_kernel, relu=relu),
        out_shape=jax.ShapeDtypeStruct((m, cout), out_dtype),
        grid=(grid_m,),
        in_specs=[
            pl.BlockSpec((tm, k), lambda i: (i, 0)),
            pl.BlockSpec((k, cout), lambda i: (0, 0)),
            pl.BlockSpec((1, cout), lambda i: (0, 0)),
        ],
        out_specs=pl.BlockSpec((tm, cout), lambda i: (i, 0)),
        compiler_params=pltpu.CompilerParams(
            dimension_semantics=("parallel",),
            vmem_limit_bytes=_vmem_limit()),
    )(x2d, w, bias2d)


# ----------------------------------------------------------------------------
# Kernel B: grouped 3x3 conv + bias + ReLU  fused with  expand 1x1 + bias +
#           residual add + ReLU.  Spatially tiled grid, manually double-
#           buffered halo DMA from a pre-padded bf16 activation in HBM.
# ----------------------------------------------------------------------------
def _gconv_expand_kernel(x_hbm, w9_ref, b2_ref, wexp_ref, b3_ref, res_ref,
                         o_ref, xbuf, sem, *, stride, ht, wout, nt, gw,
                         groups, per_group):
    b = pl.program_id(0)
    t = pl.program_id(1)
    ht_s = ht * stride
    rows_in = (ht - 1) * stride + 3  # padded-input rows needed per row tile

    def issue(tt, slot_):
        pltpu.make_async_copy(
            x_hbm.at[b, pl.ds(tt * ht_s, rows_in), :, :],
            xbuf.at[slot_], sem.at[slot_]).start()

    # Prime the double buffer at the first row tile of every image (the batch
    # axis is the megacore-parallel one; the row-tile axis runs sequentially).
    @pl.when(t == 0)
    def _():
        issue(0, 0)

    slot = t % 2
    pltpu.make_async_copy(
        x_hbm.at[b, pl.ds(t * ht_s, rows_in), :, :],
        xbuf.at[slot], sem.at[slot]).wait()

    # Prefetch the next row tile of this image while computing the current one.
    @pl.when(t + 1 < nt)
    def _():
        issue(t + 1, 1 - slot)

    m = ht * wout

    def tap(kh, kw, csl):
        if stride == 1:
            blk = xbuf[slot, kh:kh + ht, kw:kw + wout, csl]
        else:
            # TODO(synk): stride>1 tap path is not exercised by the bundled
            # self-test (which runs stride=1 configs).
            blk = xbuf[slot,
                       pl.ds(kh, ht, stride=stride),
                       pl.ds(kw, wout, stride=stride), csl]
        return blk.reshape(m, blk.shape[-1])

    # Grouped 3x3 conv: accumulated MXU dots (no (M, 9D) im2col operand).
    if per_group:
        cols = []
        for g in range(groups):
            csl = slice(g * gw, (g + 1) * gw)
            acc = None
            for kk in range(9):
                p = jnp.dot(tap(kk // 3, kk % 3, csl), w9_ref[kk, g],
                            preferred_element_type=jnp.float32)
                acc = p if acc is None else acc + p
            cols.append(acc)
        y = cols[0] if groups == 1 else jnp.concatenate(cols, axis=-1)
    else:
        acc = None
        for kk in range(9):
            p = jnp.dot(tap(kk // 3, kk % 3, slice(None)), w9_ref[kk],
                        preferred_element_type=jnp.float32)
            acc = p if acc is None else acc + p
        y = acc

    y = jnp.maximum(y + b2_ref[...], 0.0)
    # Fused expand 1x1 + bias + residual + ReLU (no intermediate HBM round trip).
    z = jnp.dot(y.astype(jnp.bfloat16), wexp_ref[...],
                preferred_element_type=jnp.float32)
    z = z + b3_ref[...] + res_ref[...].astype(jnp.float32)
    o_ref[...] = jnp.maximum(z, 0.0).astype(o_ref.dtype)


def _pick_row_tile(hout, wout, target_m):
    """Largest divisor of hout with ht*wout <= ~target_m rows per matmul."""
    ht = 1
    for cand in range(1, hout + 1):
        if hout % cand == 0 and cand * wout <= max(target_m, wout):
            ht = cand
    return ht


def gconv3x3_expand_fused(y1_padded, w9, b2, wexp, b3, res2d, *, stride, hout,
                          wout, gw, groups, per_group, target_m=512):
    n, _, wp, d = y1_padded.shape
    cout = wexp.shape[1]
    ht = _pick_row_tile(hout, wout, target_m)
    nt = hout // ht
    mt = ht * wout
    rows_in = (ht - 1) * stride + 3

    kernel = functools.partial(
        _gconv_expand_kernel, stride=stride, ht=ht, wout=wout, nt=nt, gw=gw,
        groups=groups, per_group=per_group)
    w9_idx = lambda b, t: (0,) * w9.ndim

    return pl.pallas_call(
        kernel,
        out_shape=jax.ShapeDtypeStruct((n * hout * wout, cout), jnp.bfloat16),
        grid=(n, nt),
        in_specs=[
            pl.BlockSpec(memory_space=pl.ANY),                 # padded y1 (HBM)
            pl.BlockSpec(w9.shape, w9_idx),                    # grouped weights
            pl.BlockSpec((1, d), lambda b, t: (0, 0)),         # bias 2
            pl.BlockSpec((d, cout), lambda b, t: (0, 0)),      # expand weight
            pl.BlockSpec((1, cout), lambda b, t: (0, 0)),      # bias 3
            pl.BlockSpec((mt, cout), lambda b, t: (b * nt + t, 0)),  # residual
        ],
        out_specs=pl.BlockSpec((mt, cout), lambda b, t: (b * nt + t, 0)),
        scratch_shapes=[
            pltpu.VMEM((2, rows_in, wp, d), jnp.bfloat16),     # haloed row tiles
            pltpu.SemaphoreType.DMA((2,)),
        ],
        compiler_params=pltpu.CompilerParams(
            # TODO(synk): with batch=1 on v7x, shard the spatial axis across
            # the two TensorCores instead (needs per-core prefetch priming).
            dimension_semantics=("parallel", "arbitrary"),
            vmem_limit_bytes=_vmem_limit()),
    )(y1_padded, w9, b2, wexp, b3, res2d)


# ----------------------------------------------------------------------------
# Parameter setup / glue
# ----------------------------------------------------------------------------
def bn_fold(p):
    scale = (p["gamma"] / jnp.sqrt(p["var"] + EPS)).astype(jnp.float32)
    bias = (p["beta"] - p["mean"] * scale).astype(jnp.float32)
    return scale, bias


def grouped_to_dense(w_hwio, cardinality):
    """(3,3,D//g,D) grouped HWIO weight -> (9, D, D) block-diagonal weight."""
    _, _, gin, dout = w_hwio.shape
    gout = dout // cardinality
    w = jnp.zeros((9, dout, dout), w_hwio.dtype)
    for g in range(cardinality):
        blk = w_hwio[:, :, :, g * gout:(g + 1) * gout].reshape(9, gin, gout)
        w = w.at[:, g * gin:(g + 1) * gin, g * gout:(g + 1) * gout].set(blk)
    return w


def init_params(key, in_channels, out_channels, cardinality, base_width,
                widen_factor):
    width_ratio = out_channels / (widen_factor * 64.0)
    D = cardinality * int(base_width * width_ratio)
    keys = jax.random.split(key, 8)

    def bn_params(k, c):
        k1, k2, k3, k4 = jax.random.split(k, 4)
        return dict(
            gamma=jax.random.uniform(k1, (c,), minval=0.5, maxval=1.5),
            beta=jax.random.normal(k2, (c,)) * 0.1,
            mean=jax.random.normal(k3, (c,)) * 0.1,
            var=jax.random.uniform(k4, (c,), minval=0.5, maxval=1.5),
        )

    p = dict(
        w_reduce=jax.random.normal(keys[0], (1, 1, in_channels, D)) * 0.05,
        bn_reduce=bn_params(keys[1], D),
        w_conv=jax.random.normal(keys[2], (3, 3, D // cardinality, D)) * 0.05,
        bn=bn_params(keys[3], D),
        w_expand=jax.random.normal(keys[4], (1, 1, D, out_channels)) * 0.05,
        bn_expand=bn_params(keys[5], out_channels),
    )
    if in_channels != out_channels:
        p["w_shortcut"] = (
            jax.random.normal(keys[6], (1, 1, in_channels, out_channels)) * 0.05)
        p["bn_shortcut"] = bn_params(keys[7], out_channels)
    return p


def resnext_bottleneck_forward(x_nchw, params, *, stride, cardinality):
    # NCHW only at the module boundary; channels-last (lane axis) inside.
    x = jnp.transpose(x_nchw, (0, 2, 3, 1))
    n, h, w, cin = x.shape
    D = params["w_conv"].shape[-1]
    cout = params["w_expand"].shape[-1]
    hout = (h + 2 - 3) // stride + 1
    wout = (w + 2 - 3) // stride + 1
    xb = x.astype(jnp.bfloat16)

    # conv_reduce + bn_reduce + relu  (BN scale folded into the weight).
    s1, b1 = bn_fold(params["bn_reduce"])
    w1 = (params["w_reduce"].reshape(cin, D) * s1[None, :]).astype(jnp.bfloat16)
    y1 = conv1x1_bn(xb.reshape(n * h * w, cin), w1, b1[None, :],
                    relu=True, out_dtype=jnp.bfloat16)
    # One bf16 pad pass provides every row tile's 1-pixel halo in HBM (replaces
    # the old per-image zero-fill + full-image copy inside the kernel).
    y1p = jnp.pad(y1.reshape(n, h, w, D), ((0, 0), (1, 1), (1, 1), (0, 0)))

    # Shortcut branch (projection when channel counts differ, else identity),
    # produced directly in the flattened (rows, C_out) layout Kernel B consumes.
    if "w_shortcut" in params:
        ssc, bsc = bn_fold(params["bn_shortcut"])
        wsc = (params["w_shortcut"].reshape(cin, cout)
               * ssc[None, :]).astype(jnp.bfloat16)
        xs = xb[:, ::stride, ::stride, :].reshape(n * hout * wout, cin)
        res2d = conv1x1_bn(xs, wsc, bsc[None, :], relu=False,
                           out_dtype=jnp.bfloat16)
    else:
        res2d = xb[:, ::stride, ::stride, :].reshape(n * hout * wout, cout)

    # grouped 3x3 + bn + relu  fused with  expand 1x1 + bn + residual + relu.
    s2, b2 = bn_fold(params["bn"])
    s3, b3 = bn_fold(params["bn_expand"])
    gw = D // cardinality
    per_group = (gw % 128 == 0)   # true per-group matmuls once lane-aligned
    wc = params["w_conv"] * s2[None, None, None, :]
    if per_group:
        w9 = jnp.stack(
            [wc[:, :, :, g * gw:(g + 1) * gw].reshape(9, gw, gw)
             for g in range(cardinality)], axis=1).astype(jnp.bfloat16)
    else:
        # TODO(synk): for very wide layers with tiny groups (e.g. D=1024,
        # cardinality=32) the densified weight should additionally be tiled
        # over a K grid axis instead of being held whole in VMEM.
        w9 = grouped_to_dense(wc, cardinality).astype(jnp.bfloat16)
    wexp = (params["w_expand"].reshape(D, cout)
            * s3[None, :]).astype(jnp.bfloat16)

    out2d = gconv3x3_expand_fused(
        y1p, w9, b2[None, :], wexp, b3[None, :], res2d, stride=stride,
        hout=hout, wout=wout, gw=gw,
        groups=(cardinality if per_group else 1), per_group=per_group)
    out = out2d.reshape(n, hout, wout, cout).astype(jnp.float32)
    return jnp.transpose(out, (0, 3, 1, 2))  # back to NCHW


# ----------------------------------------------------------------------------
# Pure-JAX reference (lax.conv, same bf16-input / f32-accumulate policy)
# ----------------------------------------------------------------------------
def reference_forward(x_nchw, params, *, stride, cardinality):
    x = jnp.transpose(x_nchw, (0, 2, 3, 1)).astype(jnp.float32)
    dn = ("NHWC", "HWIO", "NHWC")

    def conv(a, w, strides, padding, groups=1):
        return lax.conv_general_dilated(
            a.astype(jnp.bfloat16), w.astype(jnp.bfloat16), strides, padding,
            dimension_numbers=dn, feature_group_count=groups,
            preferred_element_type=jnp.float32)

    def bn(y, p):
        s = p["gamma"] / jnp.sqrt(p["var"] + EPS)
        return y * s + (p["beta"] - p["mean"] * s)

    y = conv(x, params["w_reduce"], (1, 1), "VALID")
    y = jax.nn.relu(bn(y, params["bn_reduce"]))
    y = conv(y, params["w_conv"], (stride, stride), ((1, 1), (1, 1)),
             groups=cardinality)
    y = jax.nn.relu(bn(y, params["bn"]))
    y = conv(y, params["w_expand"], (1, 1), "VALID")
    y = bn(y, params["bn_expand"])
    if "w_shortcut" in params:
        r = conv(x, params["w_shortcut"], (stride, stride), "VALID")
        r = bn(r, params["bn_shortcut"])
    else:
        r = x[:, ::stride, ::stride, :]
    out = jax.nn.relu(r + y)
    return jnp.transpose(out, (0, 3, 1, 2))


if __name__ == "__main__":
    # (in_c, out_c, stride, cardinality, base_width, widen, N, H, W)
    configs = [
        (64, 128, 1, 4, 16, 1, 2, 24, 24),   # D=128, gw=32: dense grouped path,
                                             # projection shortcut, 2 row tiles
        (64, 128, 1, 2, 64, 1, 1, 16, 16),   # D=256, gw=128: per-group path
        (128, 128, 1, 4, 16, 1, 1, 16, 16),  # identity shortcut
    ]
    key = jax.random.PRNGKey(0)
    for cfg in configs:
        in_c, out_c, stride, card, bw, wf, N, H, W = cfg
        key, kx, kp = jax.random.split(key, 3)
        x = jax.random.normal(kx, (N, in_c, H, W), dtype=jnp.float32)
        params = init_params(kp, in_c, out_c, card, bw, wf)

        out = jax.block_until_ready(
            resnext_bottleneck_forward(x, params, stride=stride,
                                       cardinality=card))
        ref = jax.block_until_ready(
            reference_forward(x, params, stride=stride, cardinality=card))

        hout = (H + 2 - 3) // stride + 1
        wout = (W + 2 - 3) // stride + 1
        assert out.shape == (N, out_c, hout, wout), (cfg, out.shape)
        max_err = float(jnp.max(jnp.abs(out - ref)))
        # bf16 MXU inputs + bf16 activations + folded-scale bf16 weights.
        assert jnp.allclose(out, ref, rtol=2e-2, atol=2e-2), (cfg, max_err)
    print("KERNEL_OK")
</pallas_src>

<mosaic_0001>
module attributes {stable_mosaic.version = 11 : i64} {
  func.func @_mm_bias_kernel(%arg0: i32, %arg1: memref<576x64xbf16, #tpu.memory_space<vmem>>, %arg2: memref<64x128xbf16, #tpu.memory_space<vmem>>, %arg3: memref<1x128xf32, #tpu.memory_space<vmem>>, %arg4: memref<576x128xbf16, #tpu.memory_space<vmem>>) attributes {dimension_semantics = [#tpu.dimension_semantics<parallel>], iteration_bounds = array<i64: 2>, scalar_prefetch = 0 : i64, scratch_operands = 0 : i64, tpu.core_type = #tpu.core_type<tc>, window_params = [{transform_indices = @transform_0, window_bounds = array<i64: 576, 64>}, {pipeline_mode = #tpu.pipeline_mode<synchronous>, transform_indices = @transform_1, window_bounds = array<i64: 64, 128>}, {pipeline_mode = #tpu.pipeline_mode<synchronous>, transform_indices = @transform_2, window_bounds = array<i64: 1, 128>}, {transform_indices = @transform_3, window_bounds = array<i64: 576, 128>}]} {
    %c0 = arith.constant 0 : index
    %c0_0 = arith.constant 0 : index
    %0 = vector.load %arg1[%c0, %c0_0] : memref<576x64xbf16, #tpu.memory_space<vmem>>, vector<576x64xbf16>
    %c0_1 = arith.constant 0 : index
    %c0_2 = arith.constant 0 : index
    %1 = vector.load %arg2[%c0_1, %c0_2] : memref<64x128xbf16, #tpu.memory_space<vmem>>, vector<64x128xbf16>
    %cst = arith.constant dense<0.000000e+00> : vector<576x128xf32>
    %2 = tpu.matmul %0, %1, %cst {dimension_numbers = #tpu.dot_dimension_numbers<[1], [0], [0], [1], [0, 0, 1, 1], [], []>} : vector<576x64xbf16>, vector<64x128xbf16>, vector<576x128xf32> -> vector<576x128xf32>
    %c0_3 = arith.constant 0 : index
    %c0_4 = arith.constant 0 : index
    %3 = vector.load %arg3[%c0_3, %c0_4] : memref<1x128xf32, #tpu.memory_space<vmem>>, vector<1x128xf32>
    %4 = vector.broadcast %3 : vector<1x128xf32> to vector<576x128xf32>
    %5 = arith.addf %2, %4 : vector<576x128xf32>
    %cst_5 = arith.constant 0.000000e+00 : f32
    %6 = vector.broadcast %cst_5 : f32 to vector<576x128xf32>
    %7 = arith.maximumf %5, %6 : vector<576x128xf32>
    %8 = arith.truncf %7 : vector<576x128xf32> to vector<576x128xbf16>
    %c0_6 = arith.constant 0 : index
    %c0_7 = arith.constant 0 : index
    %9 = vector.load %arg4[%c0_6, %c0_7] : memref<576x128xbf16, #tpu.memory_space<vmem>>, vector<576x128xbf16>
    tpu.vector_store %arg4[%c0_6, %c0_7], %8 {strides = array<i32>} : memref<576x128xbf16, #tpu.memory_space<vmem>>, vector<576x128xbf16>,
    return
  }
  func.func @transform_0(%arg0: i32) -> (i32, i32) {
    %c0_i32 = arith.constant 0 : i32
    %c0_i32_0 = arith.constant 0 : i32
    return %arg0, %c0_i32 : i32, i32
  }
  func.func @transform_1(%arg0: i32) -> (i32, i32) {
    %c0_i32 = arith.constant 0 : i32
    %c0_i32_0 = arith.constant 0 : i32
    %c0_i32_1 = arith.constant 0 : i32
    return %c0_i32, %c0_i32_0 : i32, i32
  }
  func.func @transform_2(%arg0: i32) -> (i32, i32) {
    %c0_i32 = arith.constant 0 : i32
    %c0_i32_0 = arith.constant 0 : i32
    %c0_i32_1 = arith.constant 0 : i32
    return %c0_i32, %c0_i32_0 : i32, i32
  }
  func.func @transform_3(%arg0: i32) -> (i32, i32) {
    %c0_i32 = arith.constant 0 : i32
    %c0_i32_0 = arith.constant 0 : i32
    return %arg0, %c0_i32 : i32, i32
  }
}

</mosaic_0001>

<llo_original>
// kernel: tpu_custom_call.1
$region0: #{tpu_custom_call.1}
  #allocation0 [shape = 'u32[]', space=smem, size = 0x4, offset = 0x4, fixed_abs, tag = 'smem constant byte address 0x4 - core index']
  #allocation1 [shape = 'u32[144,128]{1,0:T(1,128)}', space=vmem, size = 0x12000, scoped, tag = 'internal scratch']
  %s0 = inlined_call_operand.vmem [shape: bf16[1152,64], index: 0, kind: input, shape index: {}]
  %s1 = inlined_call_operand.vmem [shape: bf16[64,128], index: 1, kind: input, shape index: {}]
  %s2 = inlined_call_operand.vmem [shape: f32[1,128], index: 2, kind: input, shape index: {}]
  %s3 = inlined_call_operand.hbm [shape: bf16[1152,128], index: 3, kind: output, shape index: {}]
  %s4 = sld [smem:[#allocation0]]
  $region45: #{tpu_custom_call.1} parent=0
    _
  %s6 = ssub.s32 1, %s4
  %s7 = scalar_select 0, %s6, %s4
  $region1: #{tpu_custom_call.1} parent=0
    #allocation2 [shape = 'u8[294912]{0}', space=vmem, size = 0x48000, scoped, tag = 'output window, operand 0']
    #allocation3 [shape = 's32[2]{0}', space=sflag, size = 0x8, scoped, tag = 'scoped memory for tpu_custom_call.1']
    %8 = vsyncpa [#allocation3], 0
    %s9 = scalar_lea.sflag [#allocation3], 1
    %10 = vsyncpa %s9, 0
    loop: start=0, step=1, limit=4
    $region2: #{tpu_custom_call.1} parent=1 // loop_pre_header
      _
    $region3: #{tpu_custom_call.1} parent=1 // loop_header
      %s12 = sphi 0, %s16
      %p13 = scmp.ge.s32.totalorder %s12, 4
      %s22 = sphi 0, %s24
      %s25 = sphi 0, %s22
      %s26 = sphi 0, %s25
      %s42 = sphi 0, %s26
      %s46 = sphi 0, %s46
      %s48 = sphi 0, %s46
      %s49 = sphi 0, %s48
      %s63 = sphi 0, %s49
      %s67 = sphi 0, %s67
      %s69 = sphi 0, %s67
      %s70 = sphi 0, %s69
      %s84 = sphi 0, %s70
      %s90 = sphi 0, %s92
      %s93 = sphi 0, %s90
      %s94 = sphi 0, %s93
      %s110 = sphi 0, %s94
    $region4: #{tpu_custom_call.1} parent=1 // loop_header_branch
      %15 = sbr.rel (%p13) target = $region8
    $region5: #{tpu_custom_call.1} parent=1 // loop_body
      %s17 = ssub.s32 %s12, 1
      %s18 = ssub.s32 %s12, 2
      %s19 = sadd.s32 %s12, 1
      %s20 = ssub.s32 %s12, %s19
      %p21 = scmp.eq.s32.totalorder %s20, 0
      %s23 = sadd.s32 %s22, 1
      %s24 = scalar_select %p21, %s22, %s23
      %p27 = pneg %p21
      %p28 = scmp.eq.s32.totalorder %s12, 1
      %p29 = por %p27, %p28
      %p30 = scmp.ne.s32.totalorder %s22, %s25
      %p31 = scmp.eq.s32.totalorder %s12, 0
      %p32 = por %p30, %p31
      %p33 = scmp.ne.s32.totalorder %s22, %s25
      %p34 = scmp.eq.s32.totalorder %s17, 1
      %p35 = por %p33, %p34
      %p36 = scmp.ne.s32.totalorder %s25, %s26
      %p37 = scmp.eq.s32.totalorder %s17, 0
      %p38 = por %p36, %p37
      %p39 = scmp.ne.s32.totalorder %s25, %s26
      %p40 = scmp.eq.s32.totalorder %s18, 1
      %p41 = por %p39, %p40
      %p43 = scmp.ne.s32.totalorder %s26, %s42
      %p44 = scmp.eq.s32.totalorder %s18, 0
      %p45 = por %p43, %p44
      %s47 = sadd.s32 %s46, 1
      %p50 = scmp.eq.s32.totalorder %s12, 1
      %p51 = scmp.ne.s32.totalorder %s46, %s48
      %p52 = scmp.eq.s32.totalorder %s12, 0
      %p53 = por %p51, %p52
      %p54 = scmp.ne.s32.totalorder %s46, %s48
      %p55 = scmp.eq.s32.totalorder %s17, 1
      %p56 = por %p54, %p55
      %p57 = scmp.ne.s32.totalorder %s48, %s49
      %p58 = scmp.eq.s32.totalorder %s17, 0
      %p59 = por %p57, %p58
      %p60 = scmp.ne.s32.totalorder %s48, %s49
      %p61 = scmp.eq.s32.totalorder %s18, 1
      %p62 = por %p60, %p61
      %p64 = scmp.ne.s32.totalorder %s49, %s63
      %p65 = scmp.eq.s32.totalorder %s18, 0
      %p66 = por %p64, %p65
      %s68 = sadd.s32 %s67, 1
      %p71 = scmp.eq.s32.totalorder %s12, 1
      %p72 = scmp.ne.s32.totalorder %s67, %s69
      %p73 = scmp.eq.s32.totalorder %s12, 0
      %p74 = por %p72, %p73
      %p75 = scmp.ne.s32.totalorder %s67, %s69
      %p76 = scmp.eq.s32.totalorder %s17, 1
      %p77 = por %p75, %p76
      %p78 = scmp.ne.s32.totalorder %s69, %s70
      %p79 = scmp.eq.s32.totalorder %s17, 0
      %p80 = por %p78, %p79
      %p81 = scmp.ne.s32.totalorder %s69, %s70
      %p82 = scmp.eq.s32.totalorder %s18, 1
      %p83 = por %p81, %p82
      %p85 = scmp.ne.s32.totalorder %s70, %s84
      %p86 = scmp.eq.s32.totalorder %s18, 0
      %p87 = por %p85, %p86
      %s88 = ssub.s32 %s12, %s19
      %p89 = scmp.eq.s32.totalorder %s88, 0
      %s91 = sadd.s32 %s90, 1
      %s92 = scalar_select %p89, %s90, %s91
      %p95 = pneg %p89
      %p96 = scmp.eq.s32.totalorder %s12, 1
      %p97 = por %p95, %p96
      %p98 = scmp.ne.s32.totalorder %s90, %s93
      %p99 = scmp.eq.s32.totalorder %s12, 0
      %p100 = por %p98, %p99
      %p101 = scmp.ne.s32.totalorder %s90, %s93
      %p102 = scmp.eq.s32.totalorder %s17, 1
      %p103 = por %p101, %p102
      %p104 = scmp.ne.s32.totalorder %s93, %s94
      %p105 = scmp.eq.s32.totalorder %s17, 0
      %p106 = por %p104, %p105
      %p107 = scmp.ne.s32.totalorder %s93, %s94
      %p108 = scmp.eq.s32.totalorder %s18, 1
      %p109 = por %p107, %p108
      %p111 = scmp.ne.s32.totalorder %s94, %s110
      %p112 = scmp.eq.s32.totalorder %s18, 0
      %p113 = por %p111, %p112
      %p114 = scmp.le.s32.totalorder 1, %s12
      %p115 = scmp.lt.s32.totalorder %s12, 3
      %p116 = pnand %p114, %p115
      %p117 = pneg %p116
      // Predicated region
      $region9: #{tpu_custom_call.1} parent=5 // pred_check
        _
      $region10: #{tpu_custom_call.1} parent=5 // pred_check_branch
        %119 = sbr.rel (%p116) target = $region12
      $region11: #{tpu_custom_call.1} parent=5 // pred_region
        %s120 = ssub.s32 %s12, 1
        // Predicated region
        $region13: #{tpu_custom_call.1} parent=11 // pred_check
          %p121 = pneg %p59
        $region14: #{tpu_custom_call.1} parent=11 // pred_check_branch
          %123 = sbr.rel (%p121) target = $region16
        $region15: #{tpu_custom_call.1} parent=11 // pred_region
          _
        $region16: #{tpu_custom_call.1} parent=11 // pred_fallthru
          _
        // Predicated region
        $region17: #{tpu_custom_call.1} parent=11 // pred_check
          %p124 = pneg %p80
        $region18: #{tpu_custom_call.1} parent=11 // pred_check_branch
          %126 = sbr.rel (%p124) target = $region20
        $region19: #{tpu_custom_call.1} parent=11 // pred_region
          _
        $region20: #{tpu_custom_call.1} parent=11 // pred_fallthru
          _
      $region12: #{tpu_custom_call.1} parent=5 // pred_fallthru
        _
      %p127 = scmp.lt.s32.totalorder %s12, 2
      // Predicated region
      $region21: #{tpu_custom_call.1} parent=5 // pred_check
        %p128 = pneg %p127
      $region22: #{tpu_custom_call.1} parent=5 // pred_check_branch
        %130 = sbr.rel (%p128) target = $region24
      $region23: #{tpu_custom_call.1} parent=5 // pred_region
        // Predicated region
        $region25: #{tpu_custom_call.1} parent=23 // pred_check
          %p131 = pneg %p32
        $region26: #{tpu_custom_call.1} parent=23 // pred_check_branch
          %133 = sbr.rel (%p131) target = $region28
        $region27: #{tpu_custom_call.1} parent=23 // pred_region
          %s134 = smul.u32 72, %s12
          %p135 = scmp.lt.s32.totalorder %s134, 143
          %s136 = scalar_select %p135, %s134, 143
          %s137 = smul.addr %s136, 4
          %s138 = scalar_lea.vmem %s0, %s137
          %s139 = smul.u32 72, %s12
        $region28: #{tpu_custom_call.1} parent=23 // pred_fallthru
          _
      $region24: #{tpu_custom_call.1} parent=5 // pred_fallthru
        _
      %p140 = scmp.le.s32.totalorder 1, %s12
      %p141 = scmp.lt.s32.totalorder %s12, 3
      %p142 = pnand %p140, %p141
      %p143 = pneg %p142
      // Predicated region
      $region29: #{tpu_custom_call.1} parent=5 // pred_check
        _
      $region30: #{tpu_custom_call.1} parent=5 // pred_check_branch
        %145 = sbr.rel (%p142) target = $region32
      $region31: #{tpu_custom_call.1} parent=5 // pred_region
        %s146 = ssub.s32 %s12, 1
        %s147 = smul.u32 72, %s17
        %p148 = scmp.lt.s32.totalorder %s147, 143
        %s149 = scalar_select %p148, %s147, 143
        %s150 = smul.addr %s149, 4
        %s151 = scalar_lea.vmem %s0, %s150
        %p152 = pneg %p38
        %p153 = pneg %p35
        %p154 = pneg %p59
        %p155 = pneg %p56
        %p156 = pneg %p80
        %p157 = pneg %p77
        %p158 = pneg %p106
        %p159 = pneg %p103
        %s160 = sand.u32 %s93, 1
        %s161 = scalar_lea.sflag [#allocation3], %s160
        %s162 = sand.u32 %s93, 1
        %s163 = smul.addr %s162, 288
        %s164 = scalar_lea.vmem [#allocation2], %s163
        %s165 = smul.u32 72, %s17
        %p166 = scmp.lt.s32.totalorder %s165, 143
        %s167 = scalar_select %p166, %s165, 143
        %s168 = smul.addr %s167, 4
        %s169 = scalar_lea.vmem %s0, %s168
        %s170 = smul.u32 72, %s17
        %s171 = smul.u32 72, %s17
        %v173 = vld [vmem:[%s169] sm:$0xf]
        %v174 = vld [vmem:[%s169 + $0x4] sm:$0xf]
        %v175 = vld [vmem:[%s169 + $0x8] sm:$0xf]
        %v176 = vld [vmem:[%s169 + $0xc] sm:$0xf]
        %v177 = vld [vmem:[%s169 + $0x10] sm:$0xf]
        %v178 = vld [vmem:[%s169 + $0x14] sm:$0xf]
        %v179 = vld [vmem:[%s169 + $0x18] sm:$0xf]
        %v180 = vld [vmem:[%s169 + $0x1c] sm:$0xf]
        %v181 = vld [vmem:[%s169 + $0x20] sm:$0xf]
        %v182 = vld [vmem:[%s169 + $0x24] sm:$0xf]
        %v183 = vld [vmem:[%s169 + $0x28] sm:$0xf]
        %v184 = vld [vmem:[%s169 + $0x2c] sm:$0xf]
        %v185 = vld [vmem:[%s169 + $0x30] sm:$0xf]
        %v186 = vld [vmem:[%s169 + $0x34] sm:$0xf]
        %v187 = vld [vmem:[%s169 + $0x38] sm:$0xf]
        %v188 = vld [vmem:[%s169 + $0x3c] sm:$0xf]
        %v189 = vld [vmem:[%s169 + $0x40] sm:$0xf]
        %v190 = vld [vmem:[%s169 + $0x44] sm:$0xf]
        %v191 = vld [vmem:[%s169 + $0x48] sm:$0xf]
        %v192 = vld [vmem:[%s169 + $0x4c] sm:$0xf]
        %v193 = vld [vmem:[%s169 + $0x50] sm:$0xf]
        %v194 = vld [vmem:[%s169 + $0x54] sm:$0xf]
        %v195 = vld [vmem:[%s169 + $0x58] sm:$0xf]
        %v196 = vld [vmem:[%s169 + $0x5c] sm:$0xf]
        %v197 = vld [vmem:[%s169 + $0x60] sm:$0xf]
        %v198 = vld [vmem:[%s169 + $0x64] sm:$0xf]
        %v199 = vld [vmem:[%s169 + $0x68] sm:$0xf]
        %v200 = vld [vmem:[%s169 + $0x6c] sm:$0xf]
        %v201 = vld [vmem:[%s169 + $0x70] sm:$0xf]
        %v202 = vld [vmem:[%s169 + $0x74] sm:$0xf]
        %v203 = vld [vmem:[%s169 + $0x78] sm:$0xf]
        %v204 = vld [vmem:[%s169 + $0x7c] sm:$0xf]
        %v205 = vld [vmem:[%s169 + $0x80] sm:$0xf]
        %v206 = vld [vmem:[%s169 + $0x84] sm:$0xf]
        %v207 = vld [vmem:[%s169 + $0x88] sm:$0xf]
        %v208 = vld [vmem:[%s169 + $0x8c] sm:$0xf]
        %v209 = vld [vmem:[%s169 + $0x90] sm:$0xf]
        %v210 = vld [vmem:[%s169 + $0x94] sm:$0xf]
        %v211 = vld [vmem:[%s169 + $0x98] sm:$0xf]
        %v212 = vld [vmem:[%s169 + $0x9c] sm:$0xf]
        %v213 = vld [vmem:[%s169 + $0xa0] sm:$0xf]
        %v214 = vld [vmem:[%s169 + $0xa4] sm:$0xf]
        %v215 = vld [vmem:[%s169 + $0xa8] sm:$0xf]
        %v216 = vld [vmem:[%s169 + $0xac] sm:$0xf]
        %v217 = vld [vmem:[%s169 + $0xb0] sm:$0xf]
        %v218 = vld [vmem:[%s169 + $0xb4] sm:$0xf]
        %v219 = vld [vmem:[%s169 + $0xb8] sm:$0xf]
        %v220 = vld [vmem:[%s169 + $0xbc] sm:$0xf]
        %v221 = vld [vmem:[%s169 + $0xc0] sm:$0xf]
        %v222 = vld [vmem:[%s169 + $0xc4] sm:$0xf]
        %v223 = vld [vmem:[%s169 + $0xc8] sm:$0xf]
        %v224 = vld [vmem:[%s169 + $0xcc] sm:$0xf]
        %v225 = vld [vmem:[%s169 + $0xd0] sm:$0xf]
        %v226 = vld [vmem:[%s169 + $0xd4] sm:$0xf]
        %v227 = vld [vmem:[%s169 + $0xd8] sm:$0xf]
        %v228 = vld [vmem:[%s169 + $0xdc] sm:$0xf]
        %v229 = vld [vmem:[%s169 + $0xe0] sm:$0xf]
        %v230 = vld [vmem:[%s169 + $0xe4] sm:$0xf]
        %v231 = vld [vmem:[%s169 + $0xe8] sm:$0xf]
        %v232 = vld [vmem:[%s169 + $0xec] sm:$0xf]
        %v233 = vld [vmem:[%s169 + $0xf0] sm:$0xf]
        %v234 = vld [vmem:[%s169 + $0xf4] sm:$0xf]
        %v235 = vld [vmem:[%s169 + $0xf8] sm:$0xf]
        %v236 = vld [vmem:[%s169 + $0xfc] sm:$0xf]
        %v237 = vld [vmem:[%s169 + $0x100] sm:$0xf]
        %v238 = vld [vmem:[%s169 + $0x104] sm:$0xf]
        %v239 = vld [vmem:[%s169 + $0x108] sm:$0xf]
        %v240 = vld [vmem:[%s169 + $0x10c] sm:$0xf]
        %v241 = vld [vmem:[%s169 + $0x110] sm:$0xf]
        %v242 = vld [vmem:[%s169 + $0x114] sm:$0xf]
        %v243 = vld [vmem:[%s169 + $0x118] sm:$0xf]
        %v244 = vld [vmem:[%s169 + $0x11c] sm:$0xf]
        %v245 = vld [vmem:[%s1] sm:$0xf]
        %v246 = vld [vmem:[%s1 + $0x4] sm:$0xf]
        %v247 = vld [vmem:[%s1 + $0x8] sm:$0xf]
        %v248 = vld [vmem:[%s1 + $0xc] sm:$0xf]
        %v249 = vld [vmem:[%s1 + $0x10] sm:$0xf]
        %v250 = vld [vmem:[%s1 + $0x14] sm:$0xf]
        %v251 = vld [vmem:[%s1 + $0x18] sm:$0xf]
        %v252 = vld [vmem:[%s1 + $0x1c] sm:$0xf]
        %v253 = vld [vmem:[%s2] sm:$0x1]
        %v255 = vlaneseq
        %v256 = vshrl.u32 %v255, 7
        %v257 = vsub.s32 0, %v256
        %v258 = vrot.slane %v253, %v257
        %v332 = vunpack.c.l.b16 %v173
        %v333 = vunpack.c.l.b16 %v174
        %v334 = vunpack.c.l.b16 %v175
        %v335 = vunpack.c.l.b16 %v176
        %v336 = vunpack.c.l.b16 %v177
        %v337 = vunpack.c.l.b16 %v178
        %v338 = vunpack.c.l.b16 %v179
        %v339 = vunpack.c.l.b16 %v180
        %v340 = vunpack.c.l.b16 %v181
        %v341 = vunpack.c.l.b16 %v182
        %v342 = vunpack.c.l.b16 %v183
        %v343 = vunpack.c.l.b16 %v184
        %v344 = vunpack.c.l.b16 %v185
        %v345 = vunpack.c.l.b16 %v186
        %v346 = vunpack.c.l.b16 %v187
        %v347 = vunpack.c.l.b16 %v188
        %v348 = vunpack.c.l.b16 %v189
        %v349 = vunpack.c.l.b16 %v190
        %v350 = vunpack.c.l.b16 %v191
        %v351 = vunpack.c.l.b16 %v192
        %v352 = vunpack.c.l.b16 %v193
        %v353 = vunpack.c.l.b16 %v194
        %v354 = vunpack.c.l.b16 %v195
        %v355 = vunpack.c.l.b16 %v196
        %v356 = vunpack.c.l.b16 %v197
        %v357 = vunpack.c.l.b16 %v198
        %v358 = vunpack.c.l.b16 %v199
        %v359 = vunpack.c.l.b16 %v200
        %v360 = vunpack.c.l.b16 %v201
        %v361 = vunpack.c.l.b16 %v202
        %v362 = vunpack.c.l.b16 %v203
        %v363 = vunpack.c.l.b16 %v204
        %v364 = vunpack.c.l.b16 %v205
        %v365 = vunpack.c.l.b16 %v206
        %v366 = vunpack.c.l.b16 %v207
        %v367 = vunpack.c.l.b16 %v208
        %v368 = vunpack.c.l.b16 %v209
        %v369 = vunpack.c.l.b16 %v210
        %v370 = vunpack.c.l.b16 %v211
        %v371 = vunpack.c.l.b16 %v212
        %v372 = vunpack.c.l.b16 %v213
        %v373 = vunpack.c.l.b16 %v214
        %v374 = vunpack.c.l.b16 %v215
        %v375 = vunpack.c.l.b16 %v216
        %v376 = vunpack.c.l.b16 %v217
        %v377 = vunpack.c.l.b16 %v218
        %v378 = vunpack.c.l.b16 %v219
        %v379 = vunpack.c.l.b16 %v220
        %v380 = vunpack.c.l.b16 %v221
        %v381 = vunpack.c.l.b16 %v222
        %v382 = vunpack.c.l.b16 %v223
        %v383 = vunpack.c.l.b16 %v224
        %v384 = vunpack.c.l.b16 %v225
        %v385 = vunpack.c.l.b16 %v226
        %v386 = vunpack.c.l.b16 %v227
        %v387 = vunpack.c.l.b16 %v228
        %v388 = vunpack.c.l.b16 %v229
        %v389 = vunpack.c.l.b16 %v230
        %v390 = vunpack.c.l.b16 %v231
        %v391 = vunpack.c.l.b16 %v232
        %v392 = vunpack.c.l.b16 %v233
        %v393 = vunpack.c.l.b16 %v234
        %v394 = vunpack.c.l.b16 %v235
        %v395 = vunpack.c.l.b16 %v236
        %v396 = vunpack.c.l.b16 %v237
        %v397 = vunpack.c.l.b16 %v238
        %v398 = vunpack.c.l.b16 %v239
        %v399 = vunpack.c.l.b16 %v240
        %v400 = vunpack.c.l.b16 %v241
        %v401 = vunpack.c.l.b16 %v242
        %v402 = vunpack.c.l.b16 %v243
        %v403 = vunpack.c.l.b16 %v244
        %v404 = vpack.c.b16 %v333, %v332
        %v405 = vpack.c.b16 %v335, %v334
        %v406 = vpack.c.b16 %v337, %v336
        %v407 = vpack.c.b16 %v339, %v338
        %v408 = vpack.c.b16 %v341, %v340
        %v409 = vpack.c.b16 %v343, %v342
        %v410 = vpack.c.b16 %v345, %v344
        %v411 = vpack.c.b16 %v347, %v346
        %v412 = vpack.c.b16 %v349, %v348
        %v413 = vpack.c.b16 %v351, %v350
        %v414 = vpack.c.b16 %v353, %v352
        %v415 = vpack.c.b16 %v355, %v354
        %v416 = vpack.c.b16 %v357, %v356
        %v417 = vpack.c.b16 %v359, %v358
        %v418 = vpack.c.b16 %v361, %v360
        %v419 = vpack.c.b16 %v363, %v362
        %v420 = vpack.c.b16 %v365, %v364
        %v421 = vpack.c.b16 %v367, %v366
        %v422 = vpack.c.b16 %v369, %v368
        %v423 = vpack.c.b16 %v371, %v370
        %v424 = vpack.c.b16 %v373, %v372
        %v425 = vpack.c.b16 %v375, %v374
        %v426 = vpack.c.b16 %v377, %v376
        %v427 = vpack.c.b16 %v379, %v378
        %v428 = vpack.c.b16 %v381, %v380
        %v429 = vpack.c.b16 %v383, %v382
        %v430 = vpack.c.b16 %v385, %v384
        %v431 = vpack.c.b16 %v387, %v386
        %v432 = vpack.c.b16 %v389, %v388
        %v433 = vpack.c.b16 %v391, %v390
        %v434 = vpack.c.b16 %v393, %v392
        %v435 = vpack.c.b16 %v395, %v394
        %v436 = vpack.c.b16 %v397, %v396
        %v437 = vpack.c.b16 %v399, %v398
        %v438 = vpack.c.b16 %v401, %v400
        %v439 = vpack.c.b16 %v403, %v402
        %v448 = vunpack.c.l.b16 %v245
        %v449 = vunpack.c.l.b16 %v246
        %v450 = vunpack.c.l.b16 %v247
        %v451 = vunpack.c.l.b16 %v248
        %v452 = vunpack.c.l.b16 %v249
        %v453 = vunpack.c.l.b16 %v250
        %v454 = vunpack.c.l.b16 %v251
        %v455 = vunpack.c.l.b16 %v252
        %v456 = vpack.c.b16 %v449, %v448
        %v457 = vpack.c.b16 %v451, %v450
        %v458 = vpack.c.b16 %v453, %v452
        %v459 = vpack.c.b16 %v455, %v454
        %vm464 = vcmask 523264
        %v466 = vsel %vm464, %v404, 0
        %v469 = vsel %vm464, %v405, 0
        %v472 = vsel %vm464, %v406, 0
        %v475 = vsel %vm464, %v407, 0
        %v478 = vsel %vm464, %v408, 0
        %v481 = vsel %vm464, %v409, 0
        %v484 = vsel %vm464, %v410, 0
        %v487 = vsel %vm464, %v411, 0
        %v490 = vsel %vm464, %v412, 0
        %v493 = vsel %vm464, %v413, 0
        %v496 = vsel %vm464, %v414, 0
        %v499 = vsel %vm464, %v415, 0
        %v502 = vsel %vm464, %v416, 0
        %v505 = vsel %vm464, %v417, 0
        %v508 = vsel %vm464, %v418, 0
        %v511 = vsel %vm464, %v419, 0
        %v514 = vsel %vm464, %v420, 0
        %v517 = vsel %vm464, %v421, 0
        %v520 = vsel %vm464, %v422, 0
        %v523 = vsel %vm464, %v423, 0
        %v526 = vsel %vm464, %v424, 0
        %v529 = vsel %vm464, %v425, 0
        %v532 = vsel %vm464, %v426, 0
        %v535 = vsel %vm464, %v427, 0
        %v538 = vsel %vm464, %v428, 0
        %v541 = vsel %vm464, %v429, 0
        %v544 = vsel %vm464, %v430, 0
        %v547 = vsel %vm464, %v431, 0
        %v550 = vsel %vm464, %v432, 0
        %v553 = vsel %vm464, %v433, 0
        %v556 = vsel %vm464, %v434, 0
        %v559 = vsel %vm464, %v435, 0
        %v562 = vsel %vm464, %v436, 0
        %v565 = vsel %vm464, %v437, 0
        %v568 = vsel %vm464, %v438, 0
        %v571 = vsel %vm464, %v439, 0
        %573 = vmatprep.subr.bf16.mxu0 0
        %574 = vmatpush1.bf16.msra.mxu0 %v456
        %575 = vmatprep.subr.bf16.mxu0 0
        %576 = vmatpush1.bf16.msra.mxu0 %v457
        %577 = vmatprep.subr.bf16.mxu0 0
        %578 = vmatpush1.bf16.msra.mxu0 %v458
        %579 = vmatprep.subr.bf16.mxu0 0
        %580 = vmatpush1.bf16.msra.mxu0 %v459
        %581 = vmatprep.subr.bf16.mxu0 0
        %582 = vmatpush1.bf16.msra.mxu0 0
        %583 = vmatprep.subr.bf16.mxu0 0
        %584 = vmatpush1.bf16.msra.mxu0 0
        %585 = vmatprep.subr.bf16.mxu0 0
        %586 = vmatpush1.bf16.msra.mxu0 0
        %587 = vmatprep.subr.bf16.mxu0 0
        %588 = vmatpush1.bf16.msra.mxu0 0
        %589 = vmatprep.subr.bf16.mxu0 0
        %590 = vmatpush1.bf16.msra.mxu0 0
        %591 = vmatprep.subr.bf16.mxu0 0
        %592 = vmatpush1.bf16.msra.mxu0 0
        %593 = vmatprep.subr.bf16.mxu0 0
        %594 = vmatpush1.bf16.msra.mxu0 0
        %595 = vmatprep.subr.bf16.mxu0 0
        %596 = vmatpush1.bf16.msra.mxu0 0
        %597 = vmatprep.subr.bf16.mxu0 0
        %598 = vmatpush1.bf16.msra.mxu0 0
        %599 = vmatprep.subr.bf16.mxu0 0
        %600 = vmatpush1.bf16.msra.mxu0 0
        %601 = vmatprep.subr.bf16.mxu0 0
        %602 = vmatpush1.bf16.msra.mxu0 0
        %603 = vmatprep.subr.bf16.mxu0 0
        %604 = vmatpush1.bf16.msra.mxu0 0
        %605 = vmatprep.mubr.bf16.mxu0 0
        %606 = vmatmul.mubr.bf16.gmra.mrb[0].mxu0 %v466
        %v607 = vpop.f32.mrb[0].mxu0
        %v608 = vadd.f32 %v258, %v607
        %v609 = vpop.f32.mrb[0].mxu0
        %v610 = vpop.f32.mrb[0].mxu0
        %v611 = vadd.f32 %v258, %v610
        %v612 = vpop.f32.mrb[0].mxu0
        %613 = vmatprep.mubr.bf16.mxu0 0
        %614 = vmatmul.mubr.bf16.gmra.mrb[0].mxu0 %v469
        %v615 = vpop.f32.mrb[0].mxu0
        %v616 = vadd.f32 %v258, %v615
        %v617 = vpop.f32.mrb[0].mxu0
        %v618 = vpop.f32.mrb[0].mxu0
        %v619 = vadd.f32 %v258, %v618
        %v620 = vpop.f32.mrb[0].mxu0
        %621 = vmatprep.mubr.bf16.mxu0 0
        %622 = vmatmul.mubr.bf16.gmra.mrb[0].mxu0 %v472
        %v623 = vpop.f32.mrb[0].mxu0
        %v624 = vadd.f32 %v258, %v623
        %v625 = vpop.f32.mrb[0].mxu0
        %v626 = vpop.f32.mrb[0].mxu0
        %v627 = vadd.f32 %v258, %v626
        %v628 = vpop.f32.mrb[0].mxu0
        %629 = vmatprep.mubr.bf16.mxu0 0
        %630 = vmatmul.mubr.bf16.gmra.mrb[0].mxu0 %v475
        %v631 = vpop.f32.mrb[0].mxu0
        %v632 = vadd.f32 %v258, %v631
        %v633 = vpop.f32.mrb[0].mxu0
        %v634 = vpop.f32.mrb[0].mxu0
        %v635 = vadd.f32 %v258, %v634
        %v636 = vpop.f32.mrb[0].mxu0
        %637 = vmatprep.mubr.bf16.mxu0 0
        %638 = vmatmul.mubr.bf16.gmra.mrb[0].mxu0 %v478
        %v639 = vpop.f32.mrb[0].mxu0
        %v640 = vadd.f32 %v258, %v639
        %v641 = vpop.f32.mrb[0].mxu0
        %v642 = vpop.f32.mrb[0].mxu0
        %v643 = vadd.f32 %v258, %v642
        %v644 = vpop.f32.mrb[0].mxu0
        %645 = vmatprep.mubr.bf16.mxu0 0
        %646 = vmatmul.mubr.bf16.gmra.mrb[0].mxu0 %v481
        %v647 = vpop.f32.mrb[0].mxu0
        %v648 = vadd.f32 %v258, %v647
        %v649 = vpop.f32.mrb[0].mxu0
        %v650 = vpop.f32.mrb[0].mxu0
        %v651 = vadd.f32 %v258, %v650
        %v652 = vpop.f32.mrb[0].mxu0
        %653 = vmatprep.mubr.bf16.mxu0 0
        %654 = vmatmul.mubr.bf16.gmra.mrb[0].mxu0 %v484
        %v655 = vpop.f32.mrb[0].mxu0
        %v656 = vadd.f32 %v258, %v655
        %v657 = vpop.f32.mrb[0].mxu0
        %v658 = vpop.f32.mrb[0].mxu0
        %v659 = vadd.f32 %v258, %v658
        %v660 = vpop.f32.mrb[0].mxu0
        %661 = vmatprep.mubr.bf16.mxu0 0
        %662 = vmatmul.mubr.bf16.gmra.mrb[0].mxu0 %v487
        %v663 = vpop.f32.mrb[0].mxu0
        %v664 = vadd.f32 %v258, %v663
        %v665 = vpop.f32.mrb[0].mxu0
        %v666 = vpop.f32.mrb[0].mxu0
        %v667 = vadd.f32 %v258, %v666
        %v668 = vpop.f32.mrb[0].mxu0
        %669 = vmatprep.mubr.bf16.mxu0 0
        %670 = vmatmul.mubr.bf16.gmra.mrb[0].mxu0 %v490
        %v671 = vpop.f32.mrb[0].mxu0
        %v672 = vadd.f32 %v258, %v671
        %v673 = vpop.f32.mrb[0].mxu0
        %v674 = vpop.f32.mrb[0].mxu0
        %v675 = vadd.f32 %v258, %v674
        %v676 = vpop.f32.mrb[0].mxu0
        %677 = vmatprep.mubr.bf16.mxu0 0
        %678 = vmatmul.mubr.bf16.gmra.mrb[0].mxu0 %v493
        %v679 = vpop.f32.mrb[0].mxu0
        %v680 = vadd.f32 %v258, %v679
        %v681 = vpop.f32.mrb[0].mxu0
        %v682 = vpop.f32.mrb[0].mxu0
        %v683 = vadd.f32 %v258, %v682
        %v684 = vpop.f32.mrb[0].mxu0
        %685 = vmatprep.mubr.bf16.mxu0 0
        %686 = vmatmul.mubr.bf16.gmra.mrb[0].mxu0 %v496
        %v687 = vpop.f32.mrb[0].mxu0
        %v688 = vadd.f32 %v258, %v687
        %v689 = vpop.f32.mrb[0].mxu0
        %v690 = vpop.f32.mrb[0].mxu0
        %v691 = vadd.f32 %v258, %v690
        %v692 = vpop.f32.mrb[0].mxu0
        %693 = vmatprep.mubr.bf16.mxu0 0
        %694 = vmatmul.mubr.bf16.gmra.mrb[0].mxu0 %v499
        %v695 = vpop.f32.mrb[0].mxu0
        %v696 = vadd.f32 %v258, %v695
        %v697 = vpop.f32.mrb[0].mxu0
        %v698 = vpop.f32.mrb[0].mxu0
        %v699 = vadd.f32 %v258, %v698
        %v700 = vpop.f32.mrb[0].mxu0
        %701 = vmatprep.mubr.bf16.mxu0 0
        %702 = vmatmul.mubr.bf16.gmra.mrb[0].mxu0 %v502
        %v703 = vpop.f32.mrb[0].mxu0
        %v704 = vadd.f32 %v258, %v703
        %v705 = vpop.f32.mrb[0].mxu0
        %v706 = vpop.f32.mrb[0].mxu0
        %v707 = vadd.f32 %v258, %v706
        %v708 = vpop.f32.mrb[0].mxu0
        %709 = vmatprep.mubr.bf16.mxu0 0
        %710 = vmatmul.mubr.bf16.gmra.mrb[0].mxu0 %v505
        %v711 = vpop.f32.mrb[0].mxu0
        %v712 = vadd.f32 %v258, %v711
        %v713 = vpop.f32.mrb[0].mxu0
        %v714 = vpop.f32.mrb[0].mxu0
        %v715 = vadd.f32 %v258, %v714
        %v716 = vpop.f32.mrb[0].mxu0
        %717 = vmatprep.mubr.bf16.mxu0 0
        %718 = vmatmul.mubr.bf16.gmra.mrb[0].mxu0 %v508
        %v719 = vpop.f32.mrb[0].mxu0
        %v720 = vadd.f32 %v258, %v719
        %v721 = vpop.f32.mrb[0].mxu0
        %v722 = vpop.f32.mrb[0].mxu0
        %v723 = vadd.f32 %v258, %v722
        %v724 = vpop.f32.mrb[0].mxu0
        %725 = vmatprep.mubr.bf16.mxu0 0
        %726 = vmatmul.mubr.bf16.gmra.mrb[0].mxu0 %v511
        %v727 = vpop.f32.mrb[0].mxu0
        %v728 = vadd.f32 %v258, %v727
        %v729 = vpop.f32.mrb[0].mxu0
        %v730 = vpop.f32.mrb[0].mxu0
        %v731 = vadd.f32 %v258, %v730
        %v732 = vpop.f32.mrb[0].mxu0
        %733 = vmatprep.mubr.bf16.mxu0 0
        %734 = vmatmul.mubr.bf16.gmra.mrb[0].mxu0 %v514
        %v735 = vpop.f32.mrb[0].mxu0
        %v736 = vadd.f32 %v258, %v735
        %v737 = vpop.f32.mrb[0].mxu0
        %v738 = vpop.f32.mrb[0].mxu0
        %v739 = vadd.f32 %v258, %v738
        %v740 = vpop.f32.mrb[0].mxu0
        %741 = vmatprep.mubr.bf16.mxu0 0
        %742 = vmatmul.mubr.bf16.gmra.mrb[0].mxu0 %v517
        %v743 = vpop.f32.mrb[0].mxu0
        %v744 = vadd.f32 %v258, %v743
        %v745 = vpop.f32.mrb[0].mxu0
        %v746 = vpop.f32.mrb[0].mxu0
        %v747 = vadd.f32 %v258, %v746
        %v748 = vpop.f32.mrb[0].mxu0
        %749 = vmatprep.mubr.bf16.mxu0 0
        %750 = vmatmul.mubr.bf16.gmra.mrb[0].mxu0 %v520
        %v751 = vpop.f32.mrb[0].mxu0
        %v752 = vadd.f32 %v258, %v751
        %v753 = vpop.f32.mrb[0].mxu0
        %v754 = vpop.f32.mrb[0].mxu0
        %v755 = vadd.f32 %v258, %v754
        %v756 = vpop.f32.mrb[0].mxu0
        %757 = vmatprep.mubr.bf16.mxu0 0
        %758 = vmatmul.mubr.bf16.gmra.mrb[0].mxu0 %v523
        %v759 = vpop.f32.mrb[0].mxu0
        %v760 = vadd.f32 %v258, %v759
        %v761 = vpop.f32.mrb[0].mxu0
        %v762 = vpop.f32.mrb[0].mxu0
        %v763 = vadd.f32 %v258, %v762
        %v764 = vpop.f32.mrb[0].mxu0
        %765 = vmatprep.mubr.bf16.mxu0 0
        %766 = vmatmul.mubr.bf16.gmra.mrb[0].mxu0 %v526
        %v767 = vpop.f32.mrb[0].mxu0
        %v768 = vadd.f32 %v258, %v767
        %v769 = vpop.f32.mrb[0].mxu0
        %v770 = vpop.f32.mrb[0].mxu0
        %v771 = vadd.f32 %v258, %v770
        %v772 = vpop.f32.mrb[0].mxu0
        %773 = vmatprep.mubr.bf16.mxu0 0
        %774 = vmatmul.mubr.bf16.gmra.mrb[0].mxu0 %v529
        %v775 = vpop.f32.mrb[0].mxu0
        %v776 = vadd.f32 %v258, %v775
        %v777 = vpop.f32.mrb[0].mxu0
        %v778 = vpop.f32.mrb[0].mxu0
        %v779 = vadd.f32 %v258, %v778
        %v780 = vpop.f32.mrb[0].mxu0
        %781 = vmatprep.mubr.bf16.mxu0 0
        %782 = vmatmul.mubr.bf16.gmra.mrb[0].mxu0 %v532
        %v783 = vpop.f32.mrb[0].mxu0
        %v784 = vadd.f32 %v258, %v783
        %v785 = vpop.f32.mrb[0].mxu0
        %v786 = vpop.f32.mrb[0].mxu0
        %v787 = vadd.f32 %v258, %v786
        %v788 = vpop.f32.mrb[0].mxu0
        %789 = vmatprep.mubr.bf16.mxu0 0
        %790 = vmatmul.mubr.bf16.gmra.mrb[0].mxu0 %v535
        %v791 = vpop.f32.mrb[0].mxu0
        %v792 = vadd.f32 %v258, %v791
        %v793 = vpop.f32.mrb[0].mxu0
        %v794 = vpop.f32.mrb[0].mxu0
        %v795 = vadd.f32 %v258, %v794
        %v796 = vpop.f32.mrb[0].mxu0
        %797 = vmatprep.mubr.bf16.mxu0 0
        %798 = vmatmul.mubr.bf16.gmra.mrb[0].mxu0 %v538
        %v799 = vpop.f32.mrb[0].mxu0
        %v800 = vadd.f32 %v258, %v799
        %v801 = vpop.f32.mrb[0].mxu0
        %v802 = vpop.f32.mrb[0].mxu0
        %v803 = vadd.f32 %v258, %v802
        %v804 = vpop.f32.mrb[0].mxu0
        %805 = vmatprep.mubr.bf16.mxu0 0
        %806 = vmatmul.mubr.bf16.gmra.mrb[0].mxu0 %v541
        %v807 = vpop.f32.mrb[0].mxu0
        %v808 = vadd.f32 %v258, %v807
        %v809 = vpop.f32.mrb[0].mxu0
        %v810 = vpop.f32.mrb[0].mxu0
        %v811 = vadd.f32 %v258, %v810
        %v812 = vpop.f32.mrb[0].mxu0
        %813 = vmatprep.mubr.bf16.mxu0 0
        %814 = vmatmul.mubr.bf16.gmra.mrb[0].mxu0 %v544
        %v815 = vpop.f32.mrb[0].mxu0
        %v816 = vadd.f32 %v258, %v815
        %v817 = vpop.f32.mrb[0].mxu0
        %v818 = vpop.f32.mrb[0].mxu0
        %v819 = vadd.f32 %v258, %v818
        %v820 = vpop.f32.mrb[0].mxu0
        %821 = vmatprep.mubr.bf16.mxu0 0
        %822 = vmatmul.mubr.bf16.gmra.mrb[0].mxu0 %v547
        %v823 = vpop.f32.mrb[0].mxu0
        %v824 = vadd.f32 %v258, %v823
        %v825 = vpop.f32.mrb[0].mxu0
        %v826 = vpop.f32.mrb[0].mxu0
        %v827 = vadd.f32 %v258, %v826
        %v828 = vpop.f32.mrb[0].mxu0
        %829 = vmatprep.mubr.bf16.mxu0 0
        %830 = vmatmul.mubr.bf16.gmra.mrb[0].mxu0 %v550
        %v831 = vpop.f32.mrb[0].mxu0
        %v832 = vadd.f32 %v258, %v831
        %v833 = vpop.f32.mrb[0].mxu0
        %v834 = vpop.f32.mrb[0].mxu0
        %v835 = vadd.f32 %v258, %v834
        %v836 = vpop.f32.mrb[0].mxu0
        %837 = vmatprep.mubr.bf16.mxu0 0
        %838 = vmatmul.mubr.bf16.gmra.mrb[0].mxu0 %v553
        %v839 = vpop.f32.mrb[0].mxu0
        %v840 = vadd.f32 %v258, %v839
        %v841 = vpop.f32.mrb[0].mxu0
        %v842 = vpop.f32.mrb[0].mxu0
        %v843 = vadd.f32 %v258, %v842
        %v844 = vpop.f32.mrb[0].mxu0
        %845 = vmatprep.mubr.bf16.mxu0 0
        %846 = vmatmul.mubr.bf16.gmra.mrb[0].mxu0 %v556
        %v847 = vpop.f32.mrb[0].mxu0
        %v848 = vadd.f32 %v258, %v847
        %v849 = vpop.f32.mrb[0].mxu0
        %v850 = vpop.f32.mrb[0].mxu0
        %v851 = vadd.f32 %v258, %v850
        %v852 = vpop.f32.mrb[0].mxu0
        %853 = vmatprep.mubr.bf16.mxu0 0
        %854 = vmatmul.mubr.bf16.gmra.mrb[0].mxu0 %v559
        %v855 = vpop.f32.mrb[0].mxu0
        %v856 = vadd.f32 %v258, %v855
        %v857 = vpop.f32.mrb[0].mxu0
        %v858 = vpop.f32.mrb[0].mxu0
        %v859 = vadd.f32 %v258, %v858
        %v860 = vpop.f32.mrb[0].mxu0
        %861 = vmatprep.mubr.bf16.mxu0 0
        %862 = vmatmul.mubr.bf16.gmra.mrb[0].mxu0 %v562
        %v863 = vpop.f32.mrb[0].mxu0
        %v864 = vadd.f32 %v258, %v863
        %v865 = vpop.f32.mrb[0].mxu0
        %v866 = vpop.f32.mrb[0].mxu0
        %v867 = vadd.f32 %v258, %v866
        %v868 = vpop.f32.mrb[0].mxu0
        %869 = vmatprep.mubr.bf16.mxu0 0
        %870 = vmatmul.mubr.bf16.gmra.mrb[0].mxu0 %v565
        %v871 = vpop.f32.mrb[0].mxu0
        %v872 = vadd.f32 %v258, %v871
        %v873 = vpop.f32.mrb[0].mxu0
        %v874 = vpop.f32.mrb[0].mxu0
        %v875 = vadd.f32 %v258, %v874
        %v876 = vpop.f32.mrb[0].mxu0
        %877 = vmatprep.mubr.bf16.mxu0 0
        %878 = vmatmul.mubr.bf16.gmra.mrb[0].mxu0 %v568
        %v879 = vpop.f32.mrb[0].mxu0
        %v880 = vadd.f32 %v258, %v879
        %v881 = vpop.f32.mrb[0].mxu0
        %v882 = vpop.f32.mrb[0].mxu0
        %v883 = vadd.f32 %v258, %v882
        %v884 = vpop.f32.mrb[0].mxu0
        %885 = vmatprep.mubr.bf16.mxu0 0
        %886 = vmatmul.mubr.bf16.gmra.mrb[0].mxu0 %v571
        %v887 = vpop.f32.mrb[0].mxu0
        %v888 = vadd.f32 %v258, %v887
        %v889 = vpop.f32.mrb[0].mxu0
        %v890 = vpop.f32.mrb[0].mxu0
        %v891 = vadd.f32 %v258, %v890
        %v892 = vpop.f32.mrb[0].mxu0
        %893 = vdwg.mxu0
        %v894 = vmax.f32 %v608, 0.0
        %v895 = vmax.f32 %v611, 0.0
        %v896 = vmax.f32 %v616, 0.0
        %v897 = vmax.f32 %v619, 0.0
        %v898 = vmax.f32 %v624, 0.0
        %v899 = vmax.f32 %v627, 0.0
        %v900 = vmax.f32 %v632, 0.0
        %v901 = vmax.f32 %v635, 0.0
        %v902 = vmax.f32 %v640, 0.0
        %v903 = vmax.f32 %v643, 0.0
        %v904 = vmax.f32 %v648, 0.0
        %v905 = vmax.f32 %v651, 0.0
        %v906 = vmax.f32 %v656, 0.0
        %v907 = vmax.f32 %v659, 0.0
        %v908 = vmax.f32 %v664, 0.0
        %v909 = vmax.f32 %v667, 0.0
        %v910 = vmax.f32 %v672, 0.0
        %v911 = vmax.f32 %v675, 0.0
        %v912 = vmax.f32 %v680, 0.0
        %v913 = vmax.f32 %v683, 0.0
        %v914 = vmax.f32 %v688, 0.0
        %v915 = vmax.f32 %v691, 0.0
        %v916 = vmax.f32 %v696, 0.0
        %v917 = vmax.f32 %v699, 0.0
        %v918 = vmax.f32 %v704, 0.0
        %v919 = vmax.f32 %v707, 0.0
        %v920 = vmax.f32 %v712, 0.0
        %v921 = vmax.f32 %v715, 0.0
        %v922 = vmax.f32 %v720, 0.0
        %v923 = vmax.f32 %v723, 0.0
        %v924 = vmax.f32 %v728, 0.0
        %v925 = vmax.f32 %v731, 0.0
        %v926 = vmax.f32 %v736, 0.0
        %v927 = vmax.f32 %v739, 0.0
        %v928 = vmax.f32 %v744, 0.0
        %v929 = vmax.f32 %v747, 0.0
        %v930 = vmax.f32 %v752, 0.0
        %v931 = vmax.f32 %v755, 0.0
        %v932 = vmax.f32 %v760, 0.0
        %v933 = vmax.f32 %v763, 0.0
        %v934 = vmax.f32 %v768, 0.0
        %v935 = vmax.f32 %v771, 0.0
        %v936 = vmax.f32 %v776, 0.0
        %v937 = vmax.f32 %v779, 0.0
        %v938 = vmax.f32 %v784, 0.0
        %v939 = vmax.f32 %v787, 0.0
        %v940 = vmax.f32 %v792, 0.0
        %v941 = vmax.f32 %v795, 0.0
        %v942 = vmax.f32 %v800, 0.0
        %v943 = vmax.f32 %v803, 0.0
        %v944 = vmax.f32 %v808, 0.0
        %v945 = vmax.f32 %v811, 0.0
        %v946 = vmax.f32 %v816, 0.0
        %v947 = vmax.f32 %v819, 0.0
        %v948 = vmax.f32 %v824, 0.0
        %v949 = vmax.f32 %v827, 0.0
        %v950 = vmax.f32 %v832, 0.0
        %v951 = vmax.f32 %v835, 0.0
        %v952 = vmax.f32 %v840, 0.0
        %v953 = vmax.f32 %v843, 0.0
        %v954 = vmax.f32 %v848, 0.0
        %v955 = vmax.f32 %v851, 0.0
        %v956 = vmax.f32 %v856, 0.0
        %v957 = vmax.f32 %v859, 0.0
        %v958 = vmax.f32 %v864, 0.0
        %v959 = vmax.f32 %v867, 0.0
        %v960 = vmax.f32 %v872, 0.0
        %v961 = vmax.f32 %v875, 0.0
        %v962 = vmax.f32 %v880, 0.0
        %v963 = vmax.f32 %v883, 0.0
        %v964 = vmax.f32 %v888, 0.0
        %v965 = vmax.f32 %v891, 0.0
        %v966 = vpack.c.bf16 %v895, %v894
        %v967 = vpack.c.bf16 %v897, %v896
        %v968 = vpack.c.bf16 %v899, %v898
        %v969 = vpack.c.bf16 %v901, %v900
        %v970 = vpack.c.bf16 %v903, %v902
        %v971 = vpack.c.bf16 %v905, %v904
        %v972 = vpack.c.bf16 %v907, %v906
        %v973 = vpack.c.bf16 %v909, %v908
        %v974 = vpack.c.bf16 %v911, %v910
        %v975 = vpack.c.bf16 %v913, %v912
        %v976 = vpack.c.bf16 %v915, %v914
        %v977 = vpack.c.bf16 %v917, %v916
        %v978 = vpack.c.bf16 %v919, %v918
        %v979 = vpack.c.bf16 %v921, %v920
        %v980 = vpack.c.bf16 %v923, %v922
        %v981 = vpack.c.bf16 %v925, %v924
        %v982 = vpack.c.bf16 %v927, %v926
        %v983 = vpack.c.bf16 %v929, %v928
        %v984 = vpack.c.bf16 %v931, %v930
        %v985 = vpack.c.bf16 %v933, %v932
        %v986 = vpack.c.bf16 %v935, %v934
        %v987 = vpack.c.bf16 %v937, %v936
        %v988 = vpack.c.bf16 %v939, %v938
        %v989 = vpack.c.bf16 %v941, %v940
        %v990 = vpack.c.bf16 %v943, %v942
        %v991 = vpack.c.bf16 %v945, %v944
        %v992 = vpack.c.bf16 %v947, %v946
        %v993 = vpack.c.bf16 %v949, %v948
        %v994 = vpack.c.bf16 %v951, %v950
        %v995 = vpack.c.bf16 %v953, %v952
        %v996 = vpack.c.bf16 %v955, %v954
        %v997 = vpack.c.bf16 %v957, %v956
        %v998 = vpack.c.bf16 %v959, %v958
        %v999 = vpack.c.bf16 %v961, %v960
        %v1000 = vpack.c.bf16 %v963, %v962
        %v1001 = vpack.c.bf16 %v965, %v964
        %v1038 = vunpack.c.l.b16 %v966
        %v1039 = vunpack.c.h.b16 %v966
        %v1040 = vunpack.c.l.b16 %v967
        %v1041 = vunpack.c.h.b16 %v967
        %v1042 = vunpack.c.l.b16 %v968
        %v1043 = vunpack.c.h.b16 %v968
        %v1044 = vunpack.c.l.b16 %v969
        %v1045 = vunpack.c.h.b16 %v969
        %v1046 = vunpack.c.l.b16 %v970
        %v1047 = vunpack.c.h.b16 %v970
        %v1048 = vunpack.c.l.b16 %v971
        %v1049 = vunpack.c.h.b16 %v971
        %v1050 = vunpack.c.l.b16 %v972
        %v1051 = vunpack.c.h.b16 %v972
        %v1052 = vunpack.c.l.b16 %v973
        %v1053 = vunpack.c.h.b16 %v973
        %v1054 = vunpack.c.l.b16 %v974
        %v1055 = vunpack.c.h.b16 %v974
        %v1056 = vunpack.c.l.b16 %v975
        %v1057 = vunpack.c.h.b16 %v975
        %v1058 = vunpack.c.l.b16 %v976
        %v1059 = vunpack.c.h.b16 %v976
        %v1060 = vunpack.c.l.b16 %v977
        %v1061 = vunpack.c.h.b16 %v977
        %v1062 = vunpack.c.l.b16 %v978
        %v1063 = vunpack.c.h.b16 %v978
        %v1064 = vunpack.c.l.b16 %v979
        %v1065 = vunpack.c.h.b16 %v979
        %v1066 = vunpack.c.l.b16 %v980
        %v1067 = vunpack.c.h.b16 %v980
        %v1068 = vunpack.c.l.b16 %v981
        %v1069 = vunpack.c.h.b16 %v981
        %v1070 = vunpack.c.l.b16 %v982
        %v1071 = vunpack.c.h.b16 %v982
        %v1072 = vunpack.c.l.b16 %v983
        %v1073 = vunpack.c.h.b16 %v983
        %v1074 = vunpack.c.l.b16 %v984
        %v1075 = vunpack.c.h.b16 %v984
        %v1076 = vunpack.c.l.b16 %v985
        %v1077 = vunpack.c.h.b16 %v985
        %v1078 = vunpack.c.l.b16 %v986
        %v1079 = vunpack.c.h.b16 %v986
        %v1080 = vunpack.c.l.b16 %v987
        %v1081 = vunpack.c.h.b16 %v987
        %v1082 = vunpack.c.l.b16 %v988
        %v1083 = vunpack.c.h.b16 %v988
        %v1084 = vunpack.c.l.b16 %v989
        %v1085 = vunpack.c.h.b16 %v989
        %v1086 = vunpack.c.l.b16 %v990
        %v1087 = vunpack.c.h.b16 %v990
        %v1088 = vunpack.c.l.b16 %v991
        %v1089 = vunpack.c.h.b16 %v991
        %v1090 = vunpack.c.l.b16 %v992
        %v1091 = vunpack.c.h.b16 %v992
        %v1092 = vunpack.c.l.b16 %v993
        %v1093 = vunpack.c.h.b16 %v993
        %v1094 = vunpack.c.l.b16 %v994
        %v1095 = vunpack.c.h.b16 %v994
        %v1096 = vunpack.c.l.b16 %v995
        %v1097 = vunpack.c.h.b16 %v995
        %v1098 = vunpack.c.l.b16 %v996
        %v1099 = vunpack.c.h.b16 %v996
        %v1100 = vunpack.c.l.b16 %v997
        %v1101 = vunpack.c.h.b16 %v997
        %v1102 = vunpack.c.l.b16 %v998
        %v1103 = vunpack.c.h.b16 %v998
        %v1104 = vunpack.c.l.b16 %v999
        %v1105 = vunpack.c.h.b16 %v999
        %v1106 = vunpack.c.l.b16 %v1000
        %v1107 = vunpack.c.h.b16 %v1000
        %v1108 = vunpack.c.l.b16 %v1001
        %v1109 = vunpack.c.h.b16 %v1001
        %v1110 = vpack.c.b16 %v1038, %v1038
        %v1111 = vpack.c.b16 %v1039, %v1039
        %v1112 = vpack.c.b16 %v1040, %v1040
        %v1113 = vpack.c.b16 %v1041, %v1041
        %v1114 = vpack.c.b16 %v1042, %v1042
        %v1115 = vpack.c.b16 %v1043, %v1043
        %v1116 = vpack.c.b16 %v1044, %v1044
        %v1117 = vpack.c.b16 %v1045, %v1045
        %v1118 = vpack.c.b16 %v1046, %v1046
        %v1119 = vpack.c.b16 %v1047, %v1047
        %v1120 = vpack.c.b16 %v1048, %v1048
        %v1121 = vpack.c.b16 %v1049, %v1049
        %v1122 = vpack.c.b16 %v1050, %v1050
        %v1123 = vpack.c.b16 %v1051, %v1051
        %v1124 = vpack.c.b16 %v1052, %v1052
        %v1125 = vpack.c.b16 %v1053, %v1053
        %v1126 = vpack.c.b16 %v1054, %v1054
        %v1127 = vpack.c.b16 %v1055, %v1055
        %v1128 = vpack.c.b16 %v1056, %v1056
        %v1129 = vpack.c.b16 %v1057, %v1057
        %v1130 = vpack.c.b16 %v1058, %v1058
        %v1131 = vpack.c.b16 %v1059, %v1059
        %v1132 = vpack.c.b16 %v1060, %v1060
        %v1133 = vpack.c.b16 %v1061, %v1061
        %v1134 = vpack.c.b16 %v1062, %v1062
        %v1135 = vpack.c.b16 %v1063, %v1063
        %v1136 = vpack.c.b16 %v1064, %v1064
        %v1137 = vpack.c.b16 %v1065, %v1065
        %v1138 = vpack.c.b16 %v1066, %v1066
        %v1139 = vpack.c.b16 %v1067, %v1067
        %v1140 = vpack.c.b16 %v1068, %v1068
        %v1141 = vpack.c.b16 %v1069, %v1069
        %v1142 = vpack.c.b16 %v1070, %v1070
        %v1143 = vpack.c.b16 %v1071, %v1071
        %v1144 = vpack.c.b16 %v1072, %v1072
        %v1145 = vpack.c.b16 %v1073, %v1073
        %v1146 = vpack.c.b16 %v1074, %v1074
        %v1147 = vpack.c.b16 %v1075, %v1075
        %v1148 = vpack.c.b16 %v1076, %v1076
        %v1149 = vpack.c.b16 %v1077, %v1077
        %v1150 = vpack.c.b16 %v1078, %v1078
        %v1151 = vpack.c.b16 %v1079, %v1079
        %v1152 = vpack.c.b16 %v1080, %v1080
        %v1153 = vpack.c.b16 %v1081, %v1081
        %v1154 = vpack.c.b16 %v1082, %v1082
        %v1155 = vpack.c.b16 %v1083, %v1083
        %v1156 = vpack.c.b16 %v1084, %v1084
        %v1157 = vpack.c.b16 %v1085, %v1085
        %v1158 = vpack.c.b16 %v1086, %v1086
        %v1159 = vpack.c.b16 %v1087, %v1087
        %v1160 = vpack.c.b16 %v1088, %v1088
        %v1161 = vpack.c.b16 %v1089, %v1089
        %v1162 = vpack.c.b16 %v1090, %v1090
        %v1163 = vpack.c.b16 %v1091, %v1091
        %v1164 = vpack.c.b16 %v1092, %v1092
        %v1165 = vpack.c.b16 %v1093, %v1093
        %v1166 = vpack.c.b16 %v1094, %v1094
        %v1167 = vpack.c.b16 %v1095, %v1095
        %v1168 = vpack.c.b16 %v1096, %v1096
        %v1169 = vpack.c.b16 %v1097, %v1097
        %v1170 = vpack.c.b16 %v1098, %v1098
        %v1171 = vpack.c.b16 %v1099, %v1099
        %v1172 = vpack.c.b16 %v1100, %v1100
        %v1173 = vpack.c.b16 %v1101, %v1101
        %v1174 = vpack.c.b16 %v1102, %v1102
        %v1175 = vpack.c.b16 %v1103, %v1103
        %v1176 = vpack.c.b16 %v1104, %v1104
        %v1177 = vpack.c.b16 %v1105, %v1105
        %v1178 = vpack.c.b16 %v1106, %v1106
        %v1179 = vpack.c.b16 %v1107, %v1107
        %v1180 = vpack.c.b16 %v1108, %v1108
        %v1181 = vpack.c.b16 %v1109, %v1109
        %1254 = vst [vmem:[%s164] sm:$0xf] %v1110
        %1255 = vst [vmem:[%s164 + $0x4] sm:$0xf] %v1111
        %1256 = vst [vmem:[%s164 + $0x8] sm:$0xf] %v1112
        %1257 = vst [vmem:[%s164 + $0xc] sm:$0xf] %v1113
        %1258 = vst [vmem:[%s164 + $0x10] sm:$0xf] %v1114
        %1259 = vst [vmem:[%s164 + $0x14] sm:$0xf] %v1115
        %1260 = vst [vmem:[%s164 + $0x18] sm:$0xf] %v1116
        %1261 = vst [vmem:[%s164 + $0x1c] sm:$0xf] %v1117
        %1262 = vst [vmem:[%s164 + $0x20] sm:$0xf] %v1118
        %1263 = vst [vmem:[%s164 + $0x24] sm:$0xf] %v1119
        %1264 = vst [vmem:[%s164 + $0x28] sm:$0xf] %v1120
        %1265 = vst [vmem:[%s164 + $0x2c] sm:$0xf] %v1121
        %1266 = vst [vmem:[%s164 + $0x30] sm:$0xf] %v1122
        %1267 = vst [vmem:[%s164 + $0x34] sm:$0xf] %v1123
        %1268 = vst [vmem:[%s164 + $0x38] sm:$0xf] %v1124
        %1269 = vst [vmem:[%s164 + $0x3c] sm:$0xf] %v1125
        %1270 = vst [vmem:[%s164 + $0x40] sm:$0xf] %v1126
        %1271 = vst [vmem:[%s164 + $0x44] sm:$0xf] %v1127
        %1272 = vst [vmem:[%s164 + $0x48] sm:$0xf] %v1128
        %1273 = vst [vmem:[%s164 + $0x4c] sm:$0xf] %v1129
        %1274 = vst [vmem:[%s164 + $0x50] sm:$0xf] %v1130
        %1275 = vst [vmem:[%s164 + $0x54] sm:$0xf] %v1131
        %1276 = vst [vmem:[%s164 + $0x58] sm:$0xf] %v1132
        %1277 = vst [vmem:[%s164 + $0x5c] sm:$0xf] %v1133
        %1278 = vst [vmem:[%s164 + $0x60] sm:$0xf] %v1134
        %1279 = vst [vmem:[%s164 + $0x64] sm:$0xf] %v1135
        %1280 = vst [vmem:[%s164 + $0x68] sm:$0xf] %v1136
        %1281 = vst [vmem:[%s164 + $0x6c] sm:$0xf] %v1137
        %1282 = vst [vmem:[%s164 + $0x70] sm:$0xf] %v1138
        %1283 = vst [vmem:[%s164 + $0x74] sm:$0xf] %v1139
        %1284 = vst [vmem:[%s164 + $0x78] sm:$0xf] %v1140
        %1285 = vst [vmem:[%s164 + $0x7c] sm:$0xf] %v1141
        %1286 = vst [vmem:[%s164 + $0x80] sm:$0xf] %v1142
        %1287 = vst [vmem:[%s164 + $0x84] sm:$0xf] %v1143
        %1288 = vst [vmem:[%s164 + $0x88] sm:$0xf] %v1144
        %1289 = vst [vmem:[%s164 + $0x8c] sm:$0xf] %v1145
        %1290 = vst [vmem:[%s164 + $0x90] sm:$0xf] %v1146
        %1291 = vst [vmem:[%s164 + $0x94] sm:$0xf] %v1147
        %1292 = vst [vmem:[%s164 + $0x98] sm:$0xf] %v1148
        %1293 = vst [vmem:[%s164 + $0x9c] sm:$0xf] %v1149
        %1294 = vst [vmem:[%s164 + $0xa0] sm:$0xf] %v1150
        %1295 = vst [vmem:[%s164 + $0xa4] sm:$0xf] %v1151
        %1296 = vst [vmem:[%s164 + $0xa8] sm:$0xf] %v1152
        %1297 = vst [vmem:[%s164 + $0xac] sm:$0xf] %v1153
        %1298 = vst [vmem:[%s164 + $0xb0] sm:$0xf] %v1154
        %1299 = vst [vmem:[%s164 + $0xb4] sm:$0xf] %v1155
        %1300 = vst [vmem:[%s164 + $0xb8] sm:$0xf] %v1156
        %1301 = vst [vmem:[%s164 + $0xbc] sm:$0xf] %v1157
        %1302 = vst [vmem:[%s164 + $0xc0] sm:$0xf] %v1158
        %1303 = vst [vmem:[%s164 + $0xc4] sm:$0xf] %v1159
        %1304 = vst [vmem:[%s164 + $0xc8] sm:$0xf] %v1160
        %1305 = vst [vmem:[%s164 + $0xcc] sm:$0xf] %v1161
        %1306 = vst [vmem:[%s164 + $0xd0] sm:$0xf] %v1162
        %1307 = vst [vmem:[%s164 + $0xd4] sm:$0xf] %v1163
        %1308 = vst [vmem:[%s164 + $0xd8] sm:$0xf] %v1164
        %1309 = vst [vmem:[%s164 + $0xdc] sm:$0xf] %v1165
        %1310 = vst [vmem:[%s164 + $0xe0] sm:$0xf] %v1166
        %1311 = vst [vmem:[%s164 + $0xe4] sm:$0xf] %v1167
        %1312 = vst [vmem:[%s164 + $0xe8] sm:$0xf] %v1168
        %1313 = vst [vmem:[%s164 + $0xec] sm:$0xf] %v1169
        %1314 = vst [vmem:[%s164 + $0xf0] sm:$0xf] %v1170
        %1315 = vst [vmem:[%s164 + $0xf4] sm:$0xf] %v1171
        %1316 = vst [vmem:[%s164 + $0xf8] sm:$0xf] %v1172
        %1317 = vst [vmem:[%s164 + $0xfc] sm:$0xf] %v1173
        %1318 = vst [vmem:[%s164 + $0x100] sm:$0xf] %v1174
        %1319 = vst [vmem:[%s164 + $0x104] sm:$0xf] %v1175
        %1320 = vst [vmem:[%s164 + $0x108] sm:$0xf] %v1176
        %1321 = vst [vmem:[%s164 + $0x10c] sm:$0xf] %v1177
        %1322 = vst [vmem:[%s164 + $0x110] sm:$0xf] %v1178
        %1323 = vst [vmem:[%s164 + $0x114] sm:$0xf] %v1179
        %1324 = vst [vmem:[%s164 + $0x118] sm:$0xf] %v1180
        %1325 = vst [vmem:[%s164 + $0x11c] sm:$0xf] %v1181
        %s1326 = sand.u32 %s93, 1
        %s1327 = scalar_lea.sflag [#allocation3], %s1326
        %s1328 = sand.u32 %s93, 1
        %s1329 = smul.addr %s1328, 288
        %s1330 = scalar_lea.vmem [#allocation2], %s1329
        // Predicated region
        $region33: #{tpu_custom_call.1} parent=31 // pred_check
          %p1331 = pneg %p103
        $region34: #{tpu_custom_call.1} parent=31 // pred_check_branch
          %1333 = sbr.rel (%p1331) target = $region36
        $region35: #{tpu_custom_call.1} parent=31 // pred_region
          %s1334 = smul.u32 72, %s17
          %s1336 = ssub.s32 4608, 4608
          %1337 = vsyncadd %s1327, %s1336
          %s1338 = smul.addr %s1334, 64
          %s1339 = scalar_lea.hbm %s3, %s1338
          %s1340 = sshll.u32 %s1330, 4
          %s1341 = int_to_ptr.vmem [resolvable:$true] %s1340
          %1346 = dma.vmem_to_hbm [thread:$0]  %s1341, 4608, %s1339, %s1327, 64, 64, 4
        $region36: #{tpu_custom_call.1} parent=31 // pred_fallthru
          _
      $region32: #{tpu_custom_call.1} parent=5 // pred_fallthru
        _
      %p1347 = scmp.le.s32.totalorder 2, %s12
      // Predicated region
      $region37: #{tpu_custom_call.1} parent=5 // pred_check
        %p1348 = pneg %p1347
      $region38: #{tpu_custom_call.1} parent=5 // pred_check_branch
        %1350 = sbr.rel (%p1348) target = $region40
      $region39: #{tpu_custom_call.1} parent=5 // pred_region
        %s1351 = ssub.s32 %s12, 2
        // Predicated region
        $region41: #{tpu_custom_call.1} parent=39 // pred_check
          %p1352 = pneg %p109
        $region42: #{tpu_custom_call.1} parent=39 // pred_check_branch
          %1354 = sbr.rel (%p1352) target = $region44
        $region43: #{tpu_custom_call.1} parent=39 // pred_region
          %s1355 = sand.u32 %s94, 1
          %s1356 = scalar_lea.sflag [#allocation3], %s1355
          %s1357 = sand.u32 %s94, 1
          %s1358 = smul.addr %s1357, 288
          %s1359 = scalar_lea.vmem [#allocation2], %s1358
          %1360 = dma.done %s1356, 4608
        $region44: #{tpu_custom_call.1} parent=39 // pred_fallthru
          _
      $region40: #{tpu_custom_call.1} parent=5 // pred_fallthru
        _
    $region6: #{tpu_custom_call.1} parent=1 // loop_footer
      %s16 = sadd.s32 1, %s12
    $region7: #{tpu_custom_call.1} parent=1 // loop_footer_branch
      %11 = sbr.rel target = $region3
    $region8: #{tpu_custom_call.1} parent=1 // loop_exit
      _
    %1361 = vsyncpa [#allocation3], 1
    %s1362 = scalar_lea.sflag [#allocation3], 1
    %1363 = vsyncpa %s1362, 1

</llo_original>
